<compile_context>
chip_gen: v5e
topology: v5e:2x2
jax: 0.10.0
libtpu: 0.0.40
codegen_flags: <defaults>
</compile_context>

<pallas_src>
import functools

import jax
import jax.numpy as jnp
from jax.experimental import pallas as pl
from jax.experimental.pallas import tpu as pltpu


def _conv_relu_kernel(p_ref, w_ref, b_ref, o_ref, acc_ref, *,
                      lpn, lrn_size, lrn_alpha, lrn_beta, lrn_k):
    # p_ref: (K_t, M_t)    bf16 im2col patches tile   (K = KH*KW*Cin, M = OH*OW)
    # w_ref: (Cout_t, K_t) bf16 flattened conv weights
    # b_ref: (Cout_t, 1)   f32 conv bias
    # o_ref: (Cout_t, M_t) output tile (lane-dense, already NCHW-ordered)
    # acc_ref: (Cout_t, M_t) f32 accumulator scratch
    k = pl.program_id(3)

    @pl.when(k == 0)
    def _():
        acc_ref[...] = jnp.zeros_like(acc_ref)

    # bf16 x bf16 -> f32 accumulate on the MXU.
    acc_ref[...] += jnp.dot(w_ref[...], p_ref[...],
                            preferred_element_type=jnp.float32)

    @pl.when(k == pl.num_programs(3) - 1)
    def _():
        y = acc_ref[...] + b_ref[...]              # conv bias (no BN -> keep it)

        if lpn:
            # nn.LocalResponseNorm(size): window over source channels
            # [c - size//2, c + (size-1)//2], zero-padded at the boundary, and
            # divided by `size` (PyTorch's avg_pool3d counts padded entries).
            # Window sum done as masked sublane shifts on the XLU (no extra
            # MXU matmul, no per-step band matrix).
            cout = y.shape[0]
            sq = y * y
            cidx = jax.lax.broadcasted_iota(jnp.int32, sq.shape, 0)
            win = jnp.zeros_like(sq)
            for d in range(-(lrn_size // 2), (lrn_size - 1) // 2 + 1):
                shift = (-d) % cout
                term = sq if shift == 0 else pltpu.roll(sq, shift=shift, axis=0)
                valid = (cidx + d >= 0) & (cidx + d < cout)
                win = win + jnp.where(valid, term, 0.0)
            win = win * (1.0 / lrn_size)
            # (k + alpha*win)^-beta via EUP exp/log (argument strictly > 0).
            y = y * jnp.exp(-lrn_beta * jnp.log(lrn_k + lrn_alpha * win))

        o_ref[...] = jnp.maximum(y, 0.0).astype(o_ref.dtype)


def _pick_tile(dim, target, align):
    """Largest divisor of `dim` that is <= target and a multiple of `align`;
    falls back to the full dim (always a legal block extent)."""
    if dim <= target:
        return dim
    t = (target // align) * align
    while t >= align:
        if dim % t == 0:
            return t
        t -= align
    return dim


def conv_relu(x_nchw, w_oihw, bias, *, stride=1, padding=1, lpn=False,
              lrn_size=2, lrn_alpha=1e-4, lrn_beta=0.75, lrn_k=1.0):
    """Forward of ConvRelu.  Input/output are NCHW (PyTorch convention)."""
    N, Cin, H, W = x_nchw.shape
    Cout, _, KH, KW = w_oihw.shape
    OH = (H + 2 * padding - KH) // stride + 1
    OW = (W + 2 * padding - KW) // stride + 1
    K = KH * KW * Cin
    M = OH * OW

    # ---- plain-JAX glue: im2col built directly in (N, K, M), in bf16 -------
    # (no relayout transposes of the expanded slab; K ordering = (kh, kw, cin))
    xb = x_nchw.astype(jnp.bfloat16)
    xp = jnp.pad(xb, ((0, 0), (0, 0), (padding, padding), (padding, padding)))
    taps = []
    for kh in range(KH):
        for kw in range(KW):
            t = jax.lax.slice(
                xp, (0, 0, kh, kw),
                (N, Cin, kh + (OH - 1) * stride + 1, kw + (OW - 1) * stride + 1),
                (1, 1, stride, stride))                      # (N, Cin, OH, OW)
            taps.append(t.reshape(N, Cin, M))
    patches = jnp.stack(taps, axis=1).reshape(N, K, M)       # (N, K, M)

    # Weight slab matching the (kh, kw, cin) K ordering; bias stays f32.
    w2d = jnp.transpose(w_oihw, (0, 2, 3, 1)).reshape(Cout, K).astype(jnp.bfloat16)
    b2d = bias.reshape(Cout, 1).astype(jnp.float32)

    # ---- tiling: grid = (N, Cout-tile, M-tile, K-contraction) --------------
    # LRN(2) couples neighbouring channels, so keep Cout untiled when lpn=True.
    cout_t = Cout if lpn else _pick_tile(Cout, 256, 8)
    m_t = _pick_tile(M, 1024, 128)        # lane axis, multiple of 128
    k_t = _pick_tile(K, 1024, 128)        # contraction tile
    grid = (N, Cout // cout_t, M // m_t, K // k_t)

    kernel = functools.partial(_conv_relu_kernel, lpn=lpn, lrn_size=lrn_size,
                               lrn_alpha=lrn_alpha, lrn_beta=lrn_beta,
                               lrn_k=lrn_k)

    out = pl.pallas_call(
        kernel,
        out_shape=jax.ShapeDtypeStruct((N, Cout, M), x_nchw.dtype),
        grid=grid,
        in_specs=[
            pl.BlockSpec((None, k_t, m_t), lambda n, co, m, k: (n, k, m)),
            pl.BlockSpec((cout_t, k_t), lambda n, co, m, k: (co, k)),
            pl.BlockSpec((cout_t, 1), lambda n, co, m, k: (co, 0)),
        ],
        out_specs=pl.BlockSpec((None, cout_t, m_t), lambda n, co, m, k: (n, co, m)),
        scratch_shapes=[pltpu.VMEM((cout_t, m_t), jnp.float32)],
        compiler_params=pltpu.CompilerParams(
            dimension_semantics=("parallel", "parallel", "parallel", "arbitrary"),
            vmem_limit_bytes=64 * 1024 * 1024),
    )(patches, w2d, b2d)

    # Already NCHW-ordered: just fold OH*OW back to (OH, OW).
    return out.reshape(N, Cout, OH, OW)


def _reference(x, w, b, *, stride=1, padding=1, lpn=False,
               lrn_size=2, lrn_alpha=1e-4, lrn_beta=0.75, lrn_k=1.0):
    """Pure-JAX f32 reference matching PyTorch ConvRelu.forward."""
    conv = jax.lax.conv_general_dilated(
        x.astype(jnp.float32), w.astype(jnp.float32),
        window_strides=(stride, stride),
        padding=[(padding, padding), (padding, padding)],
        dimension_numbers=("NCHW", "OIHW", "NCHW"))
    conv = conv + b.reshape(1, -1, 1, 1)
    if lpn:
        C = conv.shape[1]
        sq = conv * conv
        sq_p = jnp.pad(sq, ((0, 0), (lrn_size // 2, (lrn_size - 1) // 2),
                            (0, 0), (0, 0)))
        win = sum(sq_p[:, i:i + C] for i in range(lrn_size)) / lrn_size
        conv = conv / (lrn_k + lrn_alpha * win) ** lrn_beta
    return jnp.maximum(conv, 0.0)


if __name__ == "__main__":
    # Module config: ConvRelu(in_ch=4, out_ch=8, kernel_size=3, stride=1, padding=1)
    in_ch, out_ch, ksize, stride, padding = 4, 8, 3, 1, 1
    N, H, W = 2, 16, 16

    key = jax.random.PRNGKey(0)
    kx, kw, kb = jax.random.split(key, 3)

    x = jax.random.normal(kx, (N, in_ch, H, W), dtype=jnp.float32)
    w = 0.1 * jax.random.normal(kw, (out_ch, in_ch, ksize, ksize), dtype=jnp.float32)
    b = 0.1 * jax.random.normal(kb, (out_ch,), dtype=jnp.float32)

    # Default path (LPN=False) and the LocalResponseNorm path (LPN=True).
    # Tolerance is relaxed vs. the f32 reference because MXU operands are bf16.
    for lpn in (False, True):
        out = conv_relu(x, w, b, stride=stride, padding=padding, lpn=lpn)
        out = jax.block_until_ready(out)
        ref = _reference(x, w, b, stride=stride, padding=padding, lpn=lpn)
        assert out.shape == (N, out_ch, H, W), out.shape
        err = float(jnp.max(jnp.abs(out - ref)))
        assert jnp.allclose(out, ref, atol=3e-2, rtol=3e-2), (lpn, err)

    print("KERNEL_OK")
</pallas_src>

<mosaic_0001>
module attributes {stable_mosaic.version = 11 : i64} {
  func.func @_conv_relu_kernel(%arg0: i32, %arg1: i32, %arg2: i32, %arg3: i32, %arg4: memref<1x36x256xbf16, #tpu.memory_space<vmem>>, %arg5: memref<8x36xbf16, #tpu.memory_space<vmem>>, %arg6: memref<8x1xf32, #tpu.memory_space<vmem>>, %arg7: memref<1x8x256xf32, #tpu.memory_space<vmem>>, %arg8: memref<8x256xf32, #tpu.memory_space<vmem>>) attributes {dimension_semantics = [#tpu.dimension_semantics<parallel>, #tpu.dimension_semantics<parallel>, #tpu.dimension_semantics<parallel>, #tpu.dimension_semantics<arbitrary>], iteration_bounds = array<i64: 2, 1, 1, 1>, scalar_prefetch = 0 : i64, scratch_operands = 1 : i64, tpu.core_type = #tpu.core_type<tc>, window_params = [{transform_indices = @transform_0, window_bounds = array<i64: 1, 36, 256>}, {transform_indices = @transform_1, window_bounds = array<i64: 8, 36>}, {transform_indices = @transform_2, window_bounds = array<i64: 8, 1>}, {transform_indices = @transform_3, window_bounds = array<i64: 1, 8, 256>}]} {
    %c0_i32 = arith.constant 0 : i32
    %0 = arith.cmpi eq, %arg3, %c0_i32 : i32
    %1 = arith.extui %0 : i1 to i32
    %c0_i32_0 = arith.constant 0 : i32
    %2 = arith.cmpi ne, %1, %c0_i32_0 : i32
    scf.if %2 {
      %cst_11 = arith.constant 0.000000e+00 : f32
      %13 = vector.broadcast %cst_11 : f32 to vector<8x256xf32>
      %c0_12 = arith.constant 0 : index
      %c0_13 = arith.constant 0 : index
      %14 = vector.load %arg8[%c0_12, %c0_13] : memref<8x256xf32, #tpu.memory_space<vmem>>, vector<8x256xf32>
      tpu.vector_store %arg8[%c0_12, %c0_13], %13 {strides = array<i32>} : memref<8x256xf32, #tpu.memory_space<vmem>>, vector<8x256xf32>,
    } else {
    }
    %c0 = arith.constant 0 : index
    %c0_1 = arith.constant 0 : index
    %3 = vector.load %arg8[%c0, %c0_1] : memref<8x256xf32, #tpu.memory_space<vmem>>, vector<8x256xf32>
    %c0_2 = arith.constant 0 : index
    %c0_3 = arith.constant 0 : index
    %4 = vector.load %arg5[%c0_2, %c0_3] : memref<8x36xbf16, #tpu.memory_space<vmem>>, vector<8x36xbf16>
    %c0_4 = arith.constant 0 : index
    %c0_5 = arith.constant 0 : index
    %c0_6 = arith.constant 0 : index
    %5 = vector.load %arg4[%c0_4, %c0_5, %c0_6] : memref<1x36x256xbf16, #tpu.memory_space<vmem>>, vector<1x36x256xbf16>
    %6 = vector.shape_cast %5 : vector<1x36x256xbf16> to vector<36x256xbf16>
    %cst = arith.constant dense<0.000000e+00> : vector<8x256xf32>
    %7 = tpu.matmul %4, %6, %cst {dimension_numbers = #tpu.dot_dimension_numbers<[1], [0], [0], [1], [0, 0, 1, 1], [], []>} : vector<8x36xbf16>, vector<36x256xbf16>, vector<8x256xf32> -> vector<8x256xf32>
    %8 = arith.addf %3, %7 : vector<8x256xf32>
    %c0_7 = arith.constant 0 : index
    %c0_8 = arith.constant 0 : index
    %9 = vector.load %arg8[%c0_7, %c0_8] : memref<8x256xf32, #tpu.memory_space<vmem>>, vector<8x256xf32>
    tpu.vector_store %arg8[%c0_7, %c0_8], %8 {strides = array<i32>} : memref<8x256xf32, #tpu.memory_space<vmem>>, vector<8x256xf32>,
    %c0_i32_9 = arith.constant 0 : i32
    %10 = arith.cmpi eq, %arg3, %c0_i32_9 : i32
    %11 = arith.extui %10 : i1 to i32
    %c0_i32_10 = arith.constant 0 : i32
    %12 = arith.cmpi ne, %11, %c0_i32_10 : i32
    scf.if %12 {
      %c0_11 = arith.constant 0 : index
      %c0_12 = arith.constant 0 : index
      %13 = vector.load %arg8[%c0_11, %c0_12] : memref<8x256xf32, #tpu.memory_space<vmem>>, vector<8x256xf32>
      %c0_13 = arith.constant 0 : index
      %c0_14 = arith.constant 0 : index
      %14 = vector.load %arg6[%c0_13, %c0_14] : memref<8x1xf32, #tpu.memory_space<vmem>>, vector<8x1xf32>
      %15 = vector.broadcast %14 : vector<8x1xf32> to vector<8x256xf32>
      %16 = arith.addf %13, %15 : vector<8x256xf32>
      %cst_15 = arith.constant 0.000000e+00 : f32
      %17 = vector.broadcast %cst_15 : f32 to vector<8x256xf32>
      %18 = arith.maximumf %16, %17 : vector<8x256xf32>
      %c0_16 = arith.constant 0 : index
      %c0_17 = arith.constant 0 : index
      %c0_18 = arith.constant 0 : index
      %19 = vector.load %arg7[%c0_16, %c0_17, %c0_18] : memref<1x8x256xf32, #tpu.memory_space<vmem>>, vector<1x8x256xf32>
      %20 = vector.shape_cast %19 : vector<1x8x256xf32> to vector<8x256xf32>
      %21 = vector.shape_cast %18 : vector<8x256xf32> to vector<1x8x256xf32>
      tpu.vector_store %arg7[%c0_16, %c0_17, %c0_18], %21 {strides = array<i32>} : memref<1x8x256xf32, #tpu.memory_space<vmem>>, vector<1x8x256xf32>,
    } else {
    }
    return
  }
  func.func @transform_0(%arg0: i32, %arg1: i32, %arg2: i32, %arg3: i32) -> (i32, i32, i32) {
    %c0_i32 = arith.constant 0 : i32
    return %arg0, %arg3, %arg2 : i32, i32, i32
  }
  func.func @transform_1(%arg0: i32, %arg1: i32, %arg2: i32, %arg3: i32) -> (i32, i32) {
    %c0_i32 = arith.constant 0 : i32
    return %arg1, %arg3 : i32, i32
  }
  func.func @transform_2(%arg0: i32, %arg1: i32, %arg2: i32, %arg3: i32) -> (i32, i32) {
    %c0_i32 = arith.constant 0 : i32
    %c0_i32_0 = arith.constant 0 : i32
    return %arg1, %c0_i32 : i32, i32
  }
  func.func @transform_3(%arg0: i32, %arg1: i32, %arg2: i32, %arg3: i32) -> (i32, i32, i32) {
    %c0_i32 = arith.constant 0 : i32
    return %arg0, %arg1, %arg2 : i32, i32, i32
  }
}

</mosaic_0001>

<llo_original>
// kernel: tpu_custom_call.1
$region0: #{tpu_custom_call.1}
  #allocation0 [shape = 'u32[]', space=smem, size = 0x4, offset = 0x4, fixed_abs, tag = 'smem constant byte address 0x4 - core index']
  #allocation1 [shape = 'u32[72,128]{1,0:T(1,128)}', space=vmem, size = 0x9000, scoped, tag = 'internal scratch']
  #allocation2 [shape = 'f32[8,256]{1,0:T(8,128)}', space=vmem, size = 0x2000, scoped, tag = 'scratch operand']
  %s0 = inlined_call_operand.vmem [shape: bf16[2,36,256], index: 0, kind: input, shape index: {}]
  %s1 = inlined_call_operand.vmem [shape: bf16[8,36], index: 1, kind: input, shape index: {}]
  %s2 = inlined_call_operand.vmem [shape: f32[8,1], index: 2, kind: input, shape index: {}]
  %s3 = inlined_call_operand.hbm [shape: f32[2,8,256], index: 3, kind: output, shape index: {}]
  %s4 = sld [smem:[#allocation0]]
  $region53: #{tpu_custom_call.1} parent=0
    _
  %s6 = ssub.s32 1, %s4
  %s7 = scalar_select 0, %s6, %s4
  $region1: #{tpu_custom_call.1} parent=0
    #allocation3 [shape = 'u8[16384]{0}', space=vmem, size = 0x4000, scoped, tag = 'output window, operand 0']
    #allocation4 [shape = 's32[2]{0}', space=sflag, size = 0x8, scoped, tag = 'scoped memory for tpu_custom_call.1']
    %8 = vsyncpa [#allocation4], 0
    %s9 = scalar_lea.sflag [#allocation4], 1
    %10 = vsyncpa %s9, 0
    loop: start=0, step=1, limit=4
    $region2: #{tpu_custom_call.1} parent=1 // loop_pre_header
      _
    $region3: #{tpu_custom_call.1} parent=1 // loop_header
      %s12 = sphi 0, %s16
      %p13 = scmp.ge.s32.totalorder %s12, 4
      %s19 = sphi 0, %s45
      %s20 = sphi 0, %s41
      %s21 = sphi 0, %s37
      %s22 = sphi 0, %s33
      %s23 = sphi 0, %s19
      %s24 = sphi 0, %s20
      %s25 = sphi 0, %s21
      %s26 = sphi 0, %s22
      %s27 = sphi 0, %s23
      %s28 = sphi 0, %s24
      %s29 = sphi 0, %s25
      %s30 = sphi 0, %s26
      %s52 = sphi 0, %s54
      %s55 = sphi 0, %s52
      %s56 = sphi 0, %s55
      %s72 = sphi 0, %s56
      %s80 = sphi 0, %s82
      %s83 = sphi 0, %s80
      %s84 = sphi 0, %s83
      %s100 = sphi 0, %s84
      %s106 = sphi 0, %s108
      %s109 = sphi 0, %s106
      %s110 = sphi 0, %s109
      %s126 = sphi 0, %s110
      %s136 = sphi 0, %s138
      %s139 = sphi 0, %s136
      %s140 = sphi 0, %s139
      %s156 = sphi 0, %s140
    $region4: #{tpu_custom_call.1} parent=1 // loop_header_branch
      %15 = sbr.rel (%p13) target = $region8
    $region5: #{tpu_custom_call.1} parent=1 // loop_body
      %s17 = ssub.s32 %s12, 1
      %s18 = ssub.s32 %s12, 2
      %s31 = sadd.s32 1, %s22
      %p32 = scmp.ge.s32.totalorder %s31, 1
      %s33 = scalar_select %p32, 0, %s31
      %s34 = sadd.s32 1, %s21
      %s35 = scalar_select %p32, %s34, %s21
      %p36 = scmp.ge.s32.totalorder %s35, 1
      %s37 = scalar_select %p36, 0, %s35
      %s38 = sadd.s32 1, %s20
      %s39 = scalar_select %p36, %s38, %s20
      %p40 = scmp.ge.s32.totalorder %s39, 1
      %s41 = scalar_select %p40, 0, %s39
      %s42 = sadd.s32 1, %s19
      %s43 = scalar_select %p40, %s42, %s19
      %p44 = scmp.ge.s32.totalorder %s43, 2
      %s45 = scalar_select %p44, 0, %s43
      %s46 = ssub.s32 %s19, %s45
      %s47 = ssub.s32 %s22, %s33
      %s48 = sor.u32 %s46, %s47
      %s49 = ssub.s32 %s21, %s37
      %s50 = sor.u32 %s48, %s49
      %p51 = scmp.eq.s32.totalorder %s50, 0
      %s53 = sadd.s32 %s52, 1
      %s54 = scalar_select %p51, %s52, %s53
      %p57 = pneg %p51
      %p58 = scmp.eq.s32.totalorder %s12, 1
      %p59 = por %p57, %p58
      %p60 = scmp.ne.s32.totalorder %s52, %s55
      %p61 = scmp.eq.s32.totalorder %s12, 0
      %p62 = por %p60, %p61
      %p63 = scmp.ne.s32.totalorder %s52, %s55
      %p64 = scmp.eq.s32.totalorder %s17, 1
      %p65 = por %p63, %p64
      %p66 = scmp.ne.s32.totalorder %s55, %s56
      %p67 = scmp.eq.s32.totalorder %s17, 0
      %p68 = por %p66, %p67
      %p69 = scmp.ne.s32.totalorder %s55, %s56
      %p70 = scmp.eq.s32.totalorder %s18, 1
      %p71 = por %p69, %p70
      %p73 = scmp.ne.s32.totalorder %s56, %s72
      %p74 = scmp.eq.s32.totalorder %s18, 0
      %p75 = por %p73, %p74
      %s76 = ssub.s32 %s20, %s41
      %s77 = ssub.s32 %s22, %s33
      %s78 = sor.u32 %s76, %s77
      %p79 = scmp.eq.s32.totalorder %s78, 0
      %s81 = sadd.s32 %s80, 1
      %s82 = scalar_select %p79, %s80, %s81
      %p85 = pneg %p79
      %p86 = scmp.eq.s32.totalorder %s12, 1
      %p87 = por %p85, %p86
      %p88 = scmp.ne.s32.totalorder %s80, %s83
      %p89 = scmp.eq.s32.totalorder %s12, 0
      %p90 = por %p88, %p89
      %p91 = scmp.ne.s32.totalorder %s80, %s83
      %p92 = scmp.eq.s32.totalorder %s17, 1
      %p93 = por %p91, %p92
      %p94 = scmp.ne.s32.totalorder %s83, %s84
      %p95 = scmp.eq.s32.totalorder %s17, 0
      %p96 = por %p94, %p95
      %p97 = scmp.ne.s32.totalorder %s83, %s84
      %p98 = scmp.eq.s32.totalorder %s18, 1
      %p99 = por %p97, %p98
      %p101 = scmp.ne.s32.totalorder %s84, %s100
      %p102 = scmp.eq.s32.totalorder %s18, 0
      %p103 = por %p101, %p102
      %s104 = ssub.s32 %s20, %s41
      %p105 = scmp.eq.s32.totalorder %s104, 0
      %s107 = sadd.s32 %s106, 1
      %s108 = scalar_select %p105, %s106, %s107
      %p111 = pneg %p105
      %p112 = scmp.eq.s32.totalorder %s12, 1
      %p113 = por %p111, %p112
      %p114 = scmp.ne.s32.totalorder %s106, %s109
      %p115 = scmp.eq.s32.totalorder %s12, 0
      %p116 = por %p114, %p115
      %p117 = scmp.ne.s32.totalorder %s106, %s109
      %p118 = scmp.eq.s32.totalorder %s17, 1
      %p119 = por %p117, %p118
      %p120 = scmp.ne.s32.totalorder %s109, %s110
      %p121 = scmp.eq.s32.totalorder %s17, 0
      %p122 = por %p120, %p121
      %p123 = scmp.ne.s32.totalorder %s109, %s110
      %p124 = scmp.eq.s32.totalorder %s18, 1
      %p125 = por %p123, %p124
      %p127 = scmp.ne.s32.totalorder %s110, %s126
      %p128 = scmp.eq.s32.totalorder %s18, 0
      %p129 = por %p127, %p128
      %s130 = ssub.s32 %s19, %s45
      %s131 = ssub.s32 %s20, %s41
      %s132 = sor.u32 %s130, %s131
      %s133 = ssub.s32 %s21, %s37
      %s134 = sor.u32 %s132, %s133
      %p135 = scmp.eq.s32.totalorder %s134, 0
      %s137 = sadd.s32 %s136, 1
      %s138 = scalar_select %p135, %s136, %s137
      %p141 = pneg %p135
      %p142 = scmp.eq.s32.totalorder %s12, 1
      %p143 = por %p141, %p142
      %p144 = scmp.ne.s32.totalorder %s136, %s139
      %p145 = scmp.eq.s32.totalorder %s12, 0
      %p146 = por %p144, %p145
      %p147 = scmp.ne.s32.totalorder %s136, %s139
      %p148 = scmp.eq.s32.totalorder %s17, 1
      %p149 = por %p147, %p148
      %p150 = scmp.ne.s32.totalorder %s139, %s140
      %p151 = scmp.eq.s32.totalorder %s17, 0
      %p152 = por %p150, %p151
      %p153 = scmp.ne.s32.totalorder %s139, %s140
      %p154 = scmp.eq.s32.totalorder %s18, 1
      %p155 = por %p153, %p154
      %p157 = scmp.ne.s32.totalorder %s140, %s156
      %p158 = scmp.eq.s32.totalorder %s18, 0
      %p159 = por %p157, %p158
      %p160 = scmp.le.s32.totalorder 1, %s12
      %p161 = scmp.lt.s32.totalorder %s12, 3
      %p162 = pnand %p160, %p161
      %p163 = pneg %p162
      // Predicated region
      $region9: #{tpu_custom_call.1} parent=5 // pred_check
        _
      $region10: #{tpu_custom_call.1} parent=5 // pred_check_branch
        %165 = sbr.rel (%p162) target = $region12
      $region11: #{tpu_custom_call.1} parent=5 // pred_region
        %s166 = ssub.s32 %s12, 1
        // Predicated region
        $region13: #{tpu_custom_call.1} parent=11 // pred_check
          %p167 = pneg %p96
        $region14: #{tpu_custom_call.1} parent=11 // pred_check_branch
          %169 = sbr.rel (%p167) target = $region16
        $region15: #{tpu_custom_call.1} parent=11 // pred_region
          %p170 = scmp.lt.s32.totalorder %s24, 0
          %s171 = scalar_select %p170, %s24, 0
          %p172 = scmp.lt.s32.totalorder %s26, 0
          %s173 = scalar_select %p172, %s26, 0
          %s174 = sadd.s32 %s173, %s171
          %s175 = smul.addr %s174, 4
          %s176 = scalar_lea.vmem %s1, %s175
        $region16: #{tpu_custom_call.1} parent=11 // pred_fallthru
          _
        // Predicated region
        $region17: #{tpu_custom_call.1} parent=11 // pred_check
          %p177 = pneg %p122
        $region18: #{tpu_custom_call.1} parent=11 // pred_check_branch
          %179 = sbr.rel (%p177) target = $region20
        $region19: #{tpu_custom_call.1} parent=11 // pred_region
          %p180 = scmp.lt.s32.totalorder %s24, 0
          %s181 = scalar_select %p180, %s24, 0
          %s182 = smul.addr %s181, 8
          %s183 = scalar_lea.vmem %s2, %s182
        $region20: #{tpu_custom_call.1} parent=11 // pred_fallthru
          _
      $region12: #{tpu_custom_call.1} parent=5 // pred_fallthru
        _
      %p184 = scmp.lt.s32.totalorder %s12, 2
      // Predicated region
      $region21: #{tpu_custom_call.1} parent=5 // pred_check
        %p185 = pneg %p184
      $region22: #{tpu_custom_call.1} parent=5 // pred_check_branch
        %187 = sbr.rel (%p185) target = $region24
      $region23: #{tpu_custom_call.1} parent=5 // pred_region
        // Predicated region
        $region25: #{tpu_custom_call.1} parent=23 // pred_check
          %p188 = pneg %p62
        $region26: #{tpu_custom_call.1} parent=23 // pred_check_branch
          %190 = sbr.rel (%p188) target = $region28
        $region27: #{tpu_custom_call.1} parent=23 // pred_region
          %s191 = smul.u32 5, %s22
          %s192 = smul.u32 2, %s21
          %p193 = scmp.lt.s32.totalorder %s19, 1
          %s194 = scalar_select %p193, %s19, 1
          %p195 = scmp.lt.s32.totalorder %s191, 4
          %s196 = scalar_select %p195, %s191, 4
          %p197 = scmp.lt.s32.totalorder %s192, 1
          %s198 = scalar_select %p197, %s192, 1
          %s199 = smul.addr %s196, 2
          %s200 = sadd.s32 %s198, %s199
          %s201 = smul.addr %s194, 10
          %s202 = sadd.s32 %s200, %s201
          %s203 = smul.addr %s202, 4
          %s204 = scalar_lea.vmem %s0, %s203
          %s205 = smul.u32 5, %s22
          %s206 = smul.u32 2, %s21
        $region28: #{tpu_custom_call.1} parent=23 // pred_fallthru
          _
      $region24: #{tpu_custom_call.1} parent=5 // pred_fallthru
        _
      %p207 = scmp.le.s32.totalorder 1, %s12
      %p208 = scmp.lt.s32.totalorder %s12, 3
      %p209 = pnand %p207, %p208
      %p210 = pneg %p209
      // Predicated region
      $region29: #{tpu_custom_call.1} parent=5 // pred_check
        _
      $region30: #{tpu_custom_call.1} parent=5 // pred_check_branch
        %212 = sbr.rel (%p209) target = $region32
      $region31: #{tpu_custom_call.1} parent=5 // pred_region
        %s213 = ssub.s32 %s12, 1
        %s214 = smul.u32 5, %s26
        %s215 = smul.u32 2, %s25
        %p216 = scmp.lt.s32.totalorder %s23, 1
        %s217 = scalar_select %p216, %s23, 1
        %p218 = scmp.lt.s32.totalorder %s214, 4
        %s219 = scalar_select %p218, %s214, 4
        %p220 = scmp.lt.s32.totalorder %s215, 1
        %s221 = scalar_select %p220, %s215, 1
        %s222 = smul.addr %s219, 2
        %s223 = sadd.s32 %s221, %s222
        %s224 = smul.addr %s217, 10
        %s225 = sadd.s32 %s223, %s224
        %s226 = smul.addr %s225, 4
        %s227 = scalar_lea.vmem %s0, %s226
        %p228 = pneg %p68
        %p229 = pneg %p65
        %p230 = scmp.lt.s32.totalorder %s24, 0
        %s231 = scalar_select %p230, %s24, 0
        %p232 = scmp.lt.s32.totalorder %s26, 0
        %s233 = scalar_select %p232, %s26, 0
        %s234 = sadd.s32 %s233, %s231
        %s235 = smul.addr %s234, 4
        %s236 = scalar_lea.vmem %s1, %s235
        %p237 = pneg %p96
        %p238 = pneg %p93
        %p239 = scmp.lt.s32.totalorder %s24, 0
        %s240 = scalar_select %p239, %s24, 0
        %s241 = smul.addr %s240, 8
        %s242 = scalar_lea.vmem %s2, %s241
        %p243 = pneg %p122
        %p244 = pneg %p119
        %p245 = pneg %p152
        %p246 = pneg %p149
        %s247 = sand.u32 %s139, 1
        %s248 = scalar_lea.sflag [#allocation4], %s247
        %s249 = sand.u32 %s139, 1
        %s250 = smul.addr %s249, 16
        %s251 = scalar_lea.vmem [#allocation3], %s250
        %s252 = smul.u32 5, %s26
        %s253 = smul.u32 2, %s25
        %p254 = scmp.lt.s32.totalorder %s23, 1
        %s255 = scalar_select %p254, %s23, 1
        %p256 = scmp.lt.s32.totalorder %s252, 4
        %s257 = scalar_select %p256, %s252, 4
        %p258 = scmp.lt.s32.totalorder %s253, 1
        %s259 = scalar_select %p258, %s253, 1
        %s260 = smul.addr %s257, 2
        %s261 = sadd.s32 %s259, %s260
        %s262 = smul.addr %s255, 10
        %s263 = sadd.s32 %s261, %s262
        %s264 = smul.addr %s263, 4
        %s265 = scalar_lea.vmem %s0, %s264
        %s266 = smul.u32 5, %s26
        %s267 = smul.u32 2, %s25
        %p268 = scmp.lt.s32.totalorder %s24, 0
        %s269 = scalar_select %p268, %s24, 0
        %p270 = scmp.lt.s32.totalorder %s26, 0
        %s271 = scalar_select %p270, %s26, 0
        %s272 = sadd.s32 %s271, %s269
        %s273 = smul.addr %s272, 4
        %s274 = scalar_lea.vmem %s1, %s273
        %p275 = scmp.lt.s32.totalorder %s24, 0
        %s276 = scalar_select %p275, %s24, 0
        %s277 = smul.addr %s276, 8
        %s278 = scalar_lea.vmem %s2, %s277
        %s279 = smul.u32 2, %s25
        %p281 = scmp.eq.s32.totalorder %s26, 0
        // Predicated region
        $region33: #{tpu_custom_call.1} parent=31 // pred_check
          %p282 = pneg %p281
        $region34: #{tpu_custom_call.1} parent=31 // pred_check_branch
          %284 = sbr.rel (%p282) target = $region36
        $region35: #{tpu_custom_call.1} parent=31 // pred_region
          %285 = vst [vmem:[#allocation2] sm:$0xff] 0.0
          %286 = vst [vmem:[#allocation2 + $0x8] sm:$0xff] 0.0
        $region36: #{tpu_custom_call.1} parent=31 // pred_fallthru
          _
        %v287 = vld [vmem:[#allocation2] sm:$0xff]
        %v288 = vld [vmem:[#allocation2 + $0x8] sm:$0xff]
        %v289 = vld [vmem:[%s274] sm:$0xf]
        %v290 = vld [vmem:[%s265] sm:$0xff]
        %v291 = vld [vmem:[%s265 + $0x8] sm:$0xff]
        %v292 = vld [vmem:[%s265 + $0x10] sm:$0xff]
        %v293 = vld [vmem:[%s265 + $0x18] sm:$0xff]
        %v294 = vld [vmem:[%s265 + $0x20] sm:$0x33]
        %v300 = vunpack.c.l.b16 %v290
        %v301 = vunpack.c.h.b16 %v290
        %v302 = vunpack.c.l.b16 %v291
        %v303 = vunpack.c.h.b16 %v291
        %v304 = vunpack.c.l.b16 %v292
        %v305 = vunpack.c.h.b16 %v292
        %v306 = vunpack.c.l.b16 %v293
        %v307 = vunpack.c.h.b16 %v293
        %v308 = vunpack.c.l.b16 %v294
        %v309 = vunpack.c.h.b16 %v294
        %v310 = vpack.c.b16 %v302, %v300
        %v311 = vpack.c.b16 %v303, %v301
        %v312 = vpack.c.b16 %v306, %v304
        %v313 = vpack.c.b16 %v307, %v305
        %v314 = vpack.c.b16 %v308, %v308
        %v315 = vpack.c.b16 %v309, %v309
        %vm320 = vcmask 293888
        %v322 = vsel %vm320, %v289, 0
        %vm324 = vcmask 1041408
        %v326 = vsel %vm324, %v314, 0
        %v329 = vsel %vm324, %v315, 0
        %331 = vmatpush.bf16.msra.mxu0 0
        %332 = vmatpush.bf16.msra.mxu0 0
        %333 = vmatpush.bf16.msra.mxu0 0
        %334 = vmatpush.bf16.msra.mxu0 0
        %335 = vmatpush.bf16.msra.mxu0 0
        %336 = vmatpush.bf16.msra.mxu0 %v326
        %337 = vmatpush.bf16.msra.mxu0 %v312
        %338 = vmatpush.bf16.msra.mxu0 %v310
        %339 = vmatmul.bf16.gmra.mxu0 %v322
        %v340 = vpop.f32.mrf.mxu0
        %v341 = vadd.f32 0.0, %v340
        %v342 = vpop.f32.mrf.mxu0
        %343 = vdwg.mxu0
        %344 = vmatpush.bf16.msra.mxu0 0
        %345 = vmatpush.bf16.msra.mxu0 0
        %346 = vmatpush.bf16.msra.mxu0 0
        %347 = vmatpush.bf16.msra.mxu0 0
        %348 = vmatpush.bf16.msra.mxu0 0
        %349 = vmatpush.bf16.msra.mxu0 %v329
        %350 = vmatpush.bf16.msra.mxu0 %v313
        %351 = vmatpush.bf16.msra.mxu0 %v311
        %352 = vmatmul.bf16.gmra.mxu0 %v322
        %v353 = vpop.f32.mrf.mxu0
        %v354 = vadd.f32 0.0, %v353
        %v355 = vpop.f32.mrf.mxu0
        %356 = vdwg.mxu0
        %v357 = vadd.f32 %v287, %v341
        %v358 = vadd.f32 %v288, %v354
        %359 = vst [vmem:[#allocation2] sm:$0xff] %v357
        %360 = vst [vmem:[#allocation2 + $0x8] sm:$0xff] %v358
        // Predicated region
        $region37: #{tpu_custom_call.1} parent=31 // pred_check
          %p361 = pneg %p281
        $region38: #{tpu_custom_call.1} parent=31 // pred_check_branch
          %363 = sbr.rel (%p361) target = $region40
        $region39: #{tpu_custom_call.1} parent=31 // pred_region
          %v364 = vld [vmem:[#allocation2] sm:$0xff]
          %v365 = vld [vmem:[#allocation2 + $0x8] sm:$0xff]
          %v366 = vld [vmem:[%s278] sm:$0xff]
          %368 = vset.pattern.permute.xlu0 0
          %369 = vperm.xlu0 %368, %v366
          %v370 = vpop.permute.xlu0 %369
          %v372 = vadd.f32 %v364, %v370
          %v373 = vadd.f32 %v365, %v370
          %v374 = vmax.f32 %v372, 0.0
          %v375 = vmax.f32 %v373, 0.0
          %376 = vst [vmem:[%s251] sm:$0xff] %v374
          %377 = vst [vmem:[%s251 + $0x8] sm:$0xff] %v375
        $region40: #{tpu_custom_call.1} parent=31 // pred_fallthru
          _
        %s378 = sand.u32 %s139, 1
        %s379 = scalar_lea.sflag [#allocation4], %s378
        %s380 = sand.u32 %s139, 1
        %s381 = smul.addr %s380, 16
        %s382 = scalar_lea.vmem [#allocation3], %s381
        // Predicated region
        $region41: #{tpu_custom_call.1} parent=31 // pred_check
          %p383 = pneg %p149
        $region42: #{tpu_custom_call.1} parent=31 // pred_check_branch
          %385 = sbr.rel (%p383) target = $region44
        $region43: #{tpu_custom_call.1} parent=31 // pred_region
          %s386 = smul.u32 2, %s25
          %388 = vsyncadd %s379, 0
          %s389 = smul.addr %s24, 2
          %s390 = sadd.s32 %s386, %s389
          %s391 = smul.addr %s23, 2
          %s392 = sadd.s32 %s390, %s391
          %s393 = smul.addr %s392, 8
          %s394 = scalar_lea.hbm %s3, %s393
          %s396 = sshll.u32 %s382, 4
          %s397 = int_to_ptr.vmem [resolvable:$true] %s396
          %s398 = sshll.u32 %s394, 4
          %s399 = int_to_ptr.hbm [resolvable:$true] %s398
          %401 = dma.vmem_to_hbm [thread:$0]  %s397, 256, %s399, %s379
        $region44: #{tpu_custom_call.1} parent=31 // pred_fallthru
          _
      $region32: #{tpu_custom_call.1} parent=5 // pred_fallthru
        _
      %p402 = scmp.le.s32.totalorder 2, %s12
      // Predicated region
      $region45: #{tpu_custom_call.1} parent=5 // pred_check
        %p403 = pneg %p402
      $region46: #{tpu_custom_call.1} parent=5 // pred_check_branch
        %405 = sbr.rel (%p403) target = $region48
      $region47: #{tpu_custom_call.1} parent=5 // pred_region
        %s406 = ssub.s32 %s12, 2
        // Predicated region
        $region49: #{tpu_custom_call.1} parent=47 // pred_check
          %p407 = pneg %p155
        $region50: #{tpu_custom_call.1} parent=47 // pred_check_branch
          %409 = sbr.rel (%p407) target = $region52
        $region51: #{tpu_custom_call.1} parent=47 // pred_region
          %s410 = sand.u32 %s140, 1
          %s411 = scalar_lea.sflag [#allocation4], %s410
          %s412 = sand.u32 %s140, 1
          %s413 = smul.addr %s412, 16
          %s414 = scalar_lea.vmem [#allocation3], %s413
          %416 = dma.done %s411, 256
        $region52: #{tpu_custom_call.1} parent=47 // pred_fallthru
          _
      $region48: #{tpu_custom_call.1} parent=5 // pred_fallthru
        _
    $region6: #{tpu_custom_call.1} parent=1 // loop_footer
      %s16 = sadd.s32 1, %s12
    $region7: #{tpu_custom_call.1} parent=1 // loop_footer_branch
      %11 = sbr.rel target = $region3
    $region8: #{tpu_custom_call.1} parent=1 // loop_exit
      _
    %417 = vsyncpa [#allocation4], 1
    %s418 = scalar_lea.sflag [#allocation4], 1
    %419 = vsyncpa %s418, 1

</llo_original>
